<compile_context>
chip_gen: v7x
topology: tpu7x:2x2x1
jax: 0.10.0
libtpu: 0.0.40
codegen_flags: <defaults>
</compile_context>

<pallas_src>
import functools

import jax
import jax.numpy as jnp
from jax import lax
from jax.experimental import pallas as pl
from jax.experimental.pallas import tpu as pltpu

# Fixed (non-trainable) weights from the module __init__, shape (1, 1, 3, 3).
KERNEL_V = jnp.array([[0.0, -1.0, 0.0],
                      [0.0,  0.0, 0.0],
                      [0.0,  1.0, 0.0]], dtype=jnp.float32)[None, None]
KERNEL_H = jnp.array([[ 0.0, 0.0, 0.0],
                      [-1.0, 0.0, 1.0],
                      [ 0.0, 0.0, 0.0]], dtype=jnp.float32)[None, None]


def _grad_kernel(x_ref, o_ref):
    # x_ref block: (B, H, W) — B whole planes; rolls along axes 1/2 stay inside
    # each plane (they never mix different planes because axis 0 is untouched).
    x = x_ref[...]
    _, H, W = x.shape

    x_dn = jnp.roll(x, -1, axis=1)   # x[h+1, w]  (wraps at h = H-1)
    x_up = jnp.roll(x,  1, axis=1)   # x[h-1, w]  (wraps at h = 0)
    x_rt = jnp.roll(x, -1, axis=2)   # x[h, w+1]  (wraps at w = W-1)
    x_lf = jnp.roll(x,  1, axis=2)   # x[h, w-1]  (wraps at w = 0)

    # Zero-padding of the 3x3 conv: zero the wrapped terms at the borders.
    row = lax.broadcasted_iota(jnp.int32, x.shape, 1)
    col = lax.broadcasted_iota(jnp.int32, x.shape, 2)
    x_dn = jnp.where(row < H - 1, x_dn, 0)
    x_up = jnp.where(row > 0, x_up, 0)
    x_rt = jnp.where(col < W - 1, x_rt, 0)
    x_lf = jnp.where(col > 0, x_lf, 0)

    v = (x_dn - x_up).astype(jnp.float32)
    h = (x_rt - x_lf).astype(jnp.float32)
    o_ref[...] = jnp.sqrt(v * v + h * h + 1e-6).astype(o_ref.dtype)


def get_gradient_nopadding(x, *, target_block_bytes=2 * 1024 * 1024):
    """x: (N, C, H, W) float array -> (N, C, H, W) gradient magnitude."""
    N, C, H, W = x.shape
    P = N * C
    xr = x.reshape(P, H, W)   # free (metadata-only) reshape

    # Planes per grid step: big enough to amortize per-step overhead, small
    # enough to double-buffer in+out in VMEM, and leave >=2 grid steps when
    # possible so megacore TCs can split the parallel axis.
    itemsize = jnp.dtype(x.dtype).itemsize
    plane_bytes = H * W * itemsize
    b_by_bytes = max(1, target_block_bytes // plane_bytes)
    b_cap = max(1, min(b_by_bytes, P // 2 if P >= 2 else 1))
    B = max(d for d in range(1, b_cap + 1) if P % d == 0)
    block_bytes = B * plane_bytes

    # TODO(synk): planes whose single (H, W) footprint is too large to
    # double-buffer in VMEM (e.g. 4k x 4k f32) would additionally need
    # row-slab tiling with a 1-row halo; not needed for the shapes here.
    vmem_limit = int(min(64 * 1024 * 1024,
                         max(16 * 1024 * 1024, 8 * block_bytes)))

    out = pl.pallas_call(
        _grad_kernel,
        out_shape=jax.ShapeDtypeStruct((P, H, W), x.dtype),
        grid=(P // B,),
        in_specs=[pl.BlockSpec((B, H, W), lambda i: (i, 0, 0))],
        out_specs=pl.BlockSpec((B, H, W), lambda i: (i, 0, 0)),
        compiler_params=pltpu.CompilerParams(
            dimension_semantics=("parallel",),
            vmem_limit_bytes=vmem_limit),
    )(xr)

    return out.reshape(N, C, H, W)


def _reference(x):
    """Pure-JAX reference using lax.conv (matches the PyTorch forward)."""
    N, C, H, W = x.shape
    xs = x.reshape(N * C, 1, H, W).astype(jnp.float32)
    dv = lax.conv_general_dilated(xs, KERNEL_V, (1, 1), [(1, 1), (1, 1)],
                                  dimension_numbers=("NCHW", "OIHW", "NCHW"))
    dh = lax.conv_general_dilated(xs, KERNEL_H, (1, 1), [(1, 1), (1, 1)],
                                  dimension_numbers=("NCHW", "OIHW", "NCHW"))
    out = jnp.sqrt(dv * dv + dh * dh + 1e-6)
    return out.reshape(N, C, H, W).astype(x.dtype)


if __name__ == "__main__":
    key = jax.random.PRNGKey(0)
    x = jax.random.normal(key, (2, 4, 16, 16), dtype=jnp.float32)

    out = jax.block_until_ready(get_gradient_nopadding(x))

    ref = _reference(x)
    assert out.shape == (2, 4, 16, 16)
    assert jnp.allclose(out, ref, atol=1e-5, rtol=1e-5), "mismatch vs reference"

    print("KERNEL_OK")
</pallas_src>

<mosaic_0001>
module attributes {stable_mosaic.version = 11 : i64} {
  func.func @_grad_kernel(%arg0: i32, %arg1: memref<4x16x16xf32, #tpu.memory_space<vmem>>, %arg2: memref<4x16x16xf32, #tpu.memory_space<vmem>>) attributes {dimension_semantics = [#tpu.dimension_semantics<parallel>], iteration_bounds = array<i64: 2>, scalar_prefetch = 0 : i64, scratch_operands = 0 : i64, tpu.core_type = #tpu.core_type<tc>, window_params = [{transform_indices = @transform_0, window_bounds = array<i64: 4, 16, 16>}, {transform_indices = @transform_1, window_bounds = array<i64: 4, 16, 16>}]} {
    %c0 = arith.constant 0 : index
    %c0_0 = arith.constant 0 : index
    %c0_1 = arith.constant 0 : index
    %0 = vector.load %arg1[%c0, %c0_0, %c0_1] : memref<4x16x16xf32, #tpu.memory_space<vmem>>, vector<4x16x16xf32>
    %1 = vector.extract_strided_slice %0 {offsets = [0, 1, 0], sizes = [4, 15, 16], strides = [1, 1, 1]} : vector<4x16x16xf32> to vector<4x15x16xf32>
    %2 = vector.extract_strided_slice %0 {offsets = [0, 0, 0], sizes = [4, 1, 16], strides = [1, 1, 1]} : vector<4x16x16xf32> to vector<4x1x16xf32>
    %3 = tpu.concatenate %1, %2 in 1 : vector<4x15x16xf32>, vector<4x1x16xf32> -> vector<4x16x16xf32>
    %4 = vector.extract_strided_slice %0 {offsets = [0, 15, 0], sizes = [4, 1, 16], strides = [1, 1, 1]} : vector<4x16x16xf32> to vector<4x1x16xf32>
    %5 = vector.extract_strided_slice %0 {offsets = [0, 0, 0], sizes = [4, 15, 16], strides = [1, 1, 1]} : vector<4x16x16xf32> to vector<4x15x16xf32>
    %6 = tpu.concatenate %4, %5 in 1 : vector<4x1x16xf32>, vector<4x15x16xf32> -> vector<4x16x16xf32>
    %7 = vector.extract_strided_slice %0 {offsets = [0, 0, 1], sizes = [4, 16, 15], strides = [1, 1, 1]} : vector<4x16x16xf32> to vector<4x16x15xf32>
    %8 = vector.extract_strided_slice %0 {offsets = [0, 0, 0], sizes = [4, 16, 1], strides = [1, 1, 1]} : vector<4x16x16xf32> to vector<4x16x1xf32>
    %9 = tpu.concatenate %7, %8 in 2 : vector<4x16x15xf32>, vector<4x16x1xf32> -> vector<4x16x16xf32>
    %10 = vector.extract_strided_slice %0 {offsets = [0, 0, 15], sizes = [4, 16, 1], strides = [1, 1, 1]} : vector<4x16x16xf32> to vector<4x16x1xf32>
    %11 = vector.extract_strided_slice %0 {offsets = [0, 0, 0], sizes = [4, 16, 15], strides = [1, 1, 1]} : vector<4x16x16xf32> to vector<4x16x15xf32>
    %12 = tpu.concatenate %10, %11 in 2 : vector<4x16x1xf32>, vector<4x16x15xf32> -> vector<4x16x16xf32>
    %13 = tpu.iota {dimensions = array<i32: 1>} : vector<4x16x16xi32>
    %14 = tpu.iota {dimensions = array<i32: 2>} : vector<4x16x16xi32>
    %c15_i32 = arith.constant 15 : i32
    %15 = vector.broadcast %c15_i32 : i32 to vector<4x16x16xi32>
    %16 = arith.cmpi slt, %13, %15 : vector<4x16x16xi32>
    %c0_i32 = arith.constant 0 : i32
    %17 = arith.sitofp %c0_i32 : i32 to f32
    %18 = vector.broadcast %17 : f32 to vector<4x16x16xf32>
    %19 = arith.select %16, %3, %18 : vector<4x16x16xi1>, vector<4x16x16xf32>
    %c0_i32_2 = arith.constant 0 : i32
    %20 = vector.broadcast %c0_i32_2 : i32 to vector<4x16x16xi32>
    %21 = arith.cmpi sgt, %13, %20 : vector<4x16x16xi32>
    %c0_i32_3 = arith.constant 0 : i32
    %22 = arith.sitofp %c0_i32_3 : i32 to f32
    %23 = vector.broadcast %22 : f32 to vector<4x16x16xf32>
    %24 = arith.select %21, %6, %23 : vector<4x16x16xi1>, vector<4x16x16xf32>
    %c15_i32_4 = arith.constant 15 : i32
    %25 = vector.broadcast %c15_i32_4 : i32 to vector<4x16x16xi32>
    %26 = arith.cmpi slt, %14, %25 : vector<4x16x16xi32>
    %c0_i32_5 = arith.constant 0 : i32
    %27 = arith.sitofp %c0_i32_5 : i32 to f32
    %28 = vector.broadcast %27 : f32 to vector<4x16x16xf32>
    %29 = arith.select %26, %9, %28 : vector<4x16x16xi1>, vector<4x16x16xf32>
    %c0_i32_6 = arith.constant 0 : i32
    %30 = vector.broadcast %c0_i32_6 : i32 to vector<4x16x16xi32>
    %31 = arith.cmpi sgt, %14, %30 : vector<4x16x16xi32>
    %c0_i32_7 = arith.constant 0 : i32
    %32 = arith.sitofp %c0_i32_7 : i32 to f32
    %33 = vector.broadcast %32 : f32 to vector<4x16x16xf32>
    %34 = arith.select %31, %12, %33 : vector<4x16x16xi1>, vector<4x16x16xf32>
    %35 = arith.subf %19, %24 : vector<4x16x16xf32>
    %36 = arith.subf %29, %34 : vector<4x16x16xf32>
    %37 = arith.mulf %35, %35 : vector<4x16x16xf32>
    %38 = arith.mulf %36, %36 : vector<4x16x16xf32>
    %39 = arith.addf %37, %38 : vector<4x16x16xf32>
    %cst = arith.constant 9.99999997E-7 : f32
    %40 = vector.broadcast %cst : f32 to vector<4x16x16xf32>
    %41 = arith.addf %39, %40 : vector<4x16x16xf32>
    %42 = math.sqrt %41 : vector<4x16x16xf32>
    %c0_8 = arith.constant 0 : index
    %c0_9 = arith.constant 0 : index
    %c0_10 = arith.constant 0 : index
    %43 = vector.load %arg2[%c0_8, %c0_9, %c0_10] : memref<4x16x16xf32, #tpu.memory_space<vmem>>, vector<4x16x16xf32>
    tpu.vector_store %arg2[%c0_8, %c0_9, %c0_10], %42 {strides = array<i32>} : memref<4x16x16xf32, #tpu.memory_space<vmem>>, vector<4x16x16xf32>,
    return
  }
  func.func @transform_0(%arg0: i32) -> (i32, i32, i32) {
    %c0_i32 = arith.constant 0 : i32
    %c0_i32_0 = arith.constant 0 : i32
    %c0_i32_1 = arith.constant 0 : i32
    return %arg0, %c0_i32, %c0_i32_0 : i32, i32, i32
  }
  func.func @transform_1(%arg0: i32) -> (i32, i32, i32) {
    %c0_i32 = arith.constant 0 : i32
    %c0_i32_0 = arith.constant 0 : i32
    %c0_i32_1 = arith.constant 0 : i32
    return %arg0, %c0_i32, %c0_i32_0 : i32, i32, i32
  }
}

</mosaic_0001>

<llo_original>
// kernel: tpu_custom_call.1
$region0: #{tpu_custom_call.1}
  #allocation0 [shape = 'u32[]', space=smem, size = 0x4, offset = 0x4, fixed_abs, tag = 'smem constant byte address 0x4 - core index']
  #allocation1 [shape = 'u32[144,128]{1,0:T(1,128)}', space=vmem, size = 0x12000, scoped, tag = 'internal scratch']
  %s0 = inlined_call_operand.hbm [shape: f32[8,16,16], index: 0, kind: input, shape index: {}]
  %s1 = inlined_call_operand.hbm [shape: f32[8,16,16], index: 1, kind: output, shape index: {}]
  %s2 = sld [smem:[#allocation0]]
  $region41: #{tpu_custom_call.1} parent=0
    _
  %s4 = ssub.s32 1, %s2
  %s5 = scalar_select 0, %s4, %s2
  $region1: #{tpu_custom_call.1} parent=0
    #allocation2 [shape = 'u8[65536]{0}', space=vmem, size = 0x10000, scoped, tag = 'input window, operand 0']
    #allocation3 [shape = 's32[2]{0}', space=sflag, size = 0x8, scoped, tag = 'scoped memory for tpu_custom_call.1']
    #allocation4 [shape = 's32[2]{0}', space=sflag, size = 0x8, scoped, tag = 'scoped memory for tpu_custom_call.1']
    #allocation5 [shape = 'u8[65536]{0}', space=vmem, size = 0x10000, scoped, tag = 'output window, operand 0']
    %6 = vsyncpa [#allocation3], 0
    %s7 = scalar_lea.sflag [#allocation3], 1
    %8 = vsyncpa %s7, 0
    %9 = vsyncpa [#allocation4], 0
    %s10 = scalar_lea.sflag [#allocation4], 1
    %11 = vsyncpa %s10, 0
    loop: start=0, step=1, limit=4
    $region2: #{tpu_custom_call.1} parent=1 // loop_pre_header
      _
    $region3: #{tpu_custom_call.1} parent=1 // loop_header
      %s13 = sphi 0, %s17
      %p14 = scmp.ge.s32.totalorder %s13, 4
      %s23 = sphi 0, %s25
      %s26 = sphi 0, %s23
      %s27 = sphi 0, %s26
      %s43 = sphi 0, %s27
      %s49 = sphi 0, %s51
      %s52 = sphi 0, %s49
      %s53 = sphi 0, %s52
      %s69 = sphi 0, %s53
    $region4: #{tpu_custom_call.1} parent=1 // loop_header_branch
      %16 = sbr.rel (%p14) target = $region8
    $region5: #{tpu_custom_call.1} parent=1 // loop_body
      %s18 = ssub.s32 %s13, 1
      %s19 = ssub.s32 %s13, 2
      %s20 = sadd.s32 %s13, 1
      %s21 = ssub.s32 %s13, %s20
      %p22 = scmp.eq.s32.totalorder %s21, 0
      %s24 = sadd.s32 %s23, 1
      %s25 = scalar_select %p22, %s23, %s24
      %p28 = pneg %p22
      %p29 = scmp.eq.s32.totalorder %s13, 1
      %p30 = por %p28, %p29
      %p31 = scmp.ne.s32.totalorder %s23, %s26
      %p32 = scmp.eq.s32.totalorder %s13, 0
      %p33 = por %p31, %p32
      %p34 = scmp.ne.s32.totalorder %s23, %s26
      %p35 = scmp.eq.s32.totalorder %s18, 1
      %p36 = por %p34, %p35
      %p37 = scmp.ne.s32.totalorder %s26, %s27
      %p38 = scmp.eq.s32.totalorder %s18, 0
      %p39 = por %p37, %p38
      %p40 = scmp.ne.s32.totalorder %s26, %s27
      %p41 = scmp.eq.s32.totalorder %s19, 1
      %p42 = por %p40, %p41
      %p44 = scmp.ne.s32.totalorder %s27, %s43
      %p45 = scmp.eq.s32.totalorder %s19, 0
      %p46 = por %p44, %p45
      %s47 = ssub.s32 %s13, %s20
      %p48 = scmp.eq.s32.totalorder %s47, 0
      %s50 = sadd.s32 %s49, 1
      %s51 = scalar_select %p48, %s49, %s50
      %p54 = pneg %p48
      %p55 = scmp.eq.s32.totalorder %s13, 1
      %p56 = por %p54, %p55
      %p57 = scmp.ne.s32.totalorder %s49, %s52
      %p58 = scmp.eq.s32.totalorder %s13, 0
      %p59 = por %p57, %p58
      %p60 = scmp.ne.s32.totalorder %s49, %s52
      %p61 = scmp.eq.s32.totalorder %s18, 1
      %p62 = por %p60, %p61
      %p63 = scmp.ne.s32.totalorder %s52, %s53
      %p64 = scmp.eq.s32.totalorder %s18, 0
      %p65 = por %p63, %p64
      %p66 = scmp.ne.s32.totalorder %s52, %s53
      %p67 = scmp.eq.s32.totalorder %s19, 1
      %p68 = por %p66, %p67
      %p70 = scmp.ne.s32.totalorder %s53, %s69
      %p71 = scmp.eq.s32.totalorder %s19, 0
      %p72 = por %p70, %p71
      %p73 = scmp.le.s32.totalorder 1, %s13
      %p74 = scmp.lt.s32.totalorder %s13, 3
      %p75 = pnand %p73, %p74
      %p76 = pneg %p75
      // Predicated region
      $region9: #{tpu_custom_call.1} parent=5 // pred_check
        _
      $region10: #{tpu_custom_call.1} parent=5 // pred_check_branch
        %78 = sbr.rel (%p75) target = $region12
      $region11: #{tpu_custom_call.1} parent=5 // pred_region
        %s79 = ssub.s32 %s13, 1
      $region12: #{tpu_custom_call.1} parent=5 // pred_fallthru
        _
      %p80 = scmp.lt.s32.totalorder %s13, 2
      // Predicated region
      $region13: #{tpu_custom_call.1} parent=5 // pred_check
        %p81 = pneg %p80
      $region14: #{tpu_custom_call.1} parent=5 // pred_check_branch
        %83 = sbr.rel (%p81) target = $region16
      $region15: #{tpu_custom_call.1} parent=5 // pred_region
        // Predicated region
        $region17: #{tpu_custom_call.1} parent=15 // pred_check
          %p84 = pneg %p33
        $region18: #{tpu_custom_call.1} parent=15 // pred_check_branch
          %86 = sbr.rel (%p84) target = $region20
        $region19: #{tpu_custom_call.1} parent=15 // pred_region
          %s87 = sand.u32 %s23, 1
          %s88 = scalar_lea.sflag [#allocation3], %s87
          %s89 = sand.u32 %s23, 1
          %s90 = smul.addr %s89, 64
          %s91 = scalar_lea.vmem [#allocation2], %s90
          %s92 = smul.u32 4, %s13
          %s94 = ssub.s32 1024, 1024
          %95 = vsyncadd %s88, %s94
          %s96 = smul.addr %s92, 2
          %s97 = smul.addr %s96, 128
          %s98 = scalar_lea.hbm %s0, %s97
          %s99 = sshll.u32 %s91, 4
          %s100 = int_to_ptr.vmem [resolvable:$true] %s99
          %105 = dma.hbm_to_vmem [thread:$0]  %s98, 1024, %s100, %s88, 128, 128, 8
        $region20: #{tpu_custom_call.1} parent=15 // pred_fallthru
          _
      $region16: #{tpu_custom_call.1} parent=5 // pred_fallthru
        _
      %p106 = scmp.le.s32.totalorder 1, %s13
      %p107 = scmp.lt.s32.totalorder %s13, 3
      %p108 = pnand %p106, %p107
      %p109 = pneg %p108
      // Predicated region
      $region21: #{tpu_custom_call.1} parent=5 // pred_check
        _
      $region22: #{tpu_custom_call.1} parent=5 // pred_check_branch
        %111 = sbr.rel (%p108) target = $region24
      $region23: #{tpu_custom_call.1} parent=5 // pred_region
        %s112 = ssub.s32 %s13, 1
        %s113 = sand.u32 %s26, 1
        %s114 = scalar_lea.sflag [#allocation3], %s113
        %s115 = sand.u32 %s26, 1
        %s116 = smul.addr %s115, 64
        %s117 = scalar_lea.vmem [#allocation2], %s116
        // Predicated region
        $region25: #{tpu_custom_call.1} parent=23 // pred_check
          %p118 = pneg %p39
        $region26: #{tpu_custom_call.1} parent=23 // pred_check_branch
          %120 = sbr.rel (%p118) target = $region28
        $region27: #{tpu_custom_call.1} parent=23 // pred_region
          %121 = dma.done %s114, 1024
        $region28: #{tpu_custom_call.1} parent=23 // pred_fallthru
          _
        %s122 = sand.u32 %s26, 1
        %s123 = scalar_lea.sflag [#allocation3], %s122
        %s124 = sand.u32 %s26, 1
        %s125 = smul.addr %s124, 64
        %s126 = scalar_lea.vmem [#allocation2], %s125
        %p127 = pneg %p39
        %p128 = pneg %p36
        %p129 = pneg %p65
        %p130 = pneg %p62
        %s131 = sand.u32 %s52, 1
        %s132 = scalar_lea.sflag [#allocation4], %s131
        %s133 = sand.u32 %s52, 1
        %s134 = smul.addr %s133, 64
        %s135 = scalar_lea.vmem [#allocation5], %s134
        %s136 = smul.u32 4, %s18
        %s137 = smul.u32 4, %s18
        %v138 = vld [vmem:[%s117] sm:$0xff]
        %v139 = vld [vmem:[%s117 + $0x8] sm:$0xff]
        %v140 = vld [vmem:[%s117 + $0x10] sm:$0xff]
        %v141 = vld [vmem:[%s117 + $0x18] sm:$0xff]
        %v142 = vld [vmem:[%s117 + $0x20] sm:$0xff]
        %v143 = vld [vmem:[%s117 + $0x28] sm:$0xff]
        %v144 = vld [vmem:[%s117 + $0x30] sm:$0xff]
        %v145 = vld [vmem:[%s117 + $0x38] sm:$0xff]
        %vm154 = vcmask 1046528
        %v155 = vrot.slane %v138, 1
        %v156 = vrot.slane %v139, 1
        %v157 = vsel %vm154, %v155, %v156
        %v158 = vrot.slane %v140, 1
        %v159 = vrot.slane %v141, 1
        %v160 = vsel %vm154, %v158, %v159
        %v161 = vrot.slane %v142, 1
        %v162 = vrot.slane %v143, 1
        %v163 = vsel %vm154, %v161, %v162
        %v164 = vrot.slane %v144, 1
        %v165 = vrot.slane %v145, 1
        %v166 = vsel %vm154, %v164, %v165
        %v179 = vsel %vm154, %v156, %v155
        %v180 = vsel %vm154, %v159, %v158
        %v181 = vsel %vm154, %v162, %v161
        %v182 = vsel %vm154, %v165, %v164
        %v183 = vrot.slane %v139, 7
        %v184 = vrot.slane %v141, 7
        %v185 = vrot.slane %v143, 7
        %v186 = vrot.slane %v145, 7
        %vm191 = vcmask 1040384
        %v192 = vrot.slane %v138, 7
        %v193 = vsel %vm191, %v192, %v183
        %v194 = vrot.slane %v140, 7
        %v195 = vsel %vm191, %v194, %v184
        %v196 = vrot.slane %v142, 7
        %v197 = vsel %vm191, %v196, %v185
        %v198 = vrot.slane %v144, 7
        %v199 = vsel %vm191, %v198, %v186
        %v208 = vsel %vm191, %v183, %v192
        %v209 = vsel %vm191, %v184, %v194
        %v210 = vsel %vm191, %v185, %v196
        %v211 = vsel %vm191, %v186, %v198
        %212 = vrot.lane.b32.xlu0 %v138, 127
        %v213 = vpop.permute.xlu0 %212
        %214 = vrot.lane.b32.xlu0 %v139, 127
        %v215 = vpop.permute.xlu0 %214
        %216 = vrot.lane.b32.xlu0 %v140, 127
        %v217 = vpop.permute.xlu0 %216
        %218 = vrot.lane.b32.xlu0 %v141, 127
        %v219 = vpop.permute.xlu0 %218
        %220 = vrot.lane.b32.xlu0 %v142, 127
        %v221 = vpop.permute.xlu0 %220
        %222 = vrot.lane.b32.xlu0 %v143, 127
        %v223 = vpop.permute.xlu0 %222
        %224 = vrot.lane.b32.xlu0 %v144, 127
        %v225 = vpop.permute.xlu0 %224
        %226 = vrot.lane.b32.xlu0 %v145, 127
        %v227 = vpop.permute.xlu0 %226
        %236 = vrot.lane.b32.xlu0 %v138, 15
        %v237 = vpop.permute.xlu0 %236
        %238 = vrot.lane.b32.xlu0 %v139, 15
        %v239 = vpop.permute.xlu0 %238
        %240 = vrot.lane.b32.xlu0 %v140, 15
        %v241 = vpop.permute.xlu0 %240
        %242 = vrot.lane.b32.xlu0 %v141, 15
        %v243 = vpop.permute.xlu0 %242
        %244 = vrot.lane.b32.xlu0 %v142, 15
        %v245 = vpop.permute.xlu0 %244
        %246 = vrot.lane.b32.xlu0 %v143, 15
        %v247 = vpop.permute.xlu0 %246
        %248 = vrot.lane.b32.xlu0 %v144, 15
        %v249 = vpop.permute.xlu0 %248
        %250 = vrot.lane.b32.xlu0 %v145, 15
        %v251 = vpop.permute.xlu0 %250
        %vm260 = vcmask 121856
        %v261 = vsel %vm260, %v213, %v237
        %v262 = vsel %vm260, %v215, %v239
        %v263 = vsel %vm260, %v217, %v241
        %v264 = vsel %vm260, %v219, %v243
        %v265 = vsel %vm260, %v221, %v245
        %v266 = vsel %vm260, %v223, %v247
        %v267 = vsel %vm260, %v225, %v249
        %v268 = vsel %vm260, %v227, %v251
        %269 = vrot.lane.b32.xlu0 %v138, 113
        %v270 = vpop.permute.xlu0 %269
        %271 = vrot.lane.b32.xlu0 %v139, 113
        %v272 = vpop.permute.xlu0 %271
        %273 = vrot.lane.b32.xlu0 %v140, 113
        %v274 = vpop.permute.xlu0 %273
        %275 = vrot.lane.b32.xlu0 %v141, 113
        %v276 = vpop.permute.xlu0 %275
        %277 = vrot.lane.b32.xlu0 %v142, 113
        %v278 = vpop.permute.xlu0 %277
        %279 = vrot.lane.b32.xlu0 %v143, 113
        %v280 = vpop.permute.xlu0 %279
        %281 = vrot.lane.b32.xlu0 %v144, 113
        %v282 = vpop.permute.xlu0 %281
        %283 = vrot.lane.b32.xlu0 %v145, 113
        %v284 = vpop.permute.xlu0 %283
        %293 = vrot.lane.b32.xlu0 %v138, 1
        %v294 = vpop.permute.xlu0 %293
        %295 = vrot.lane.b32.xlu0 %v139, 1
        %v296 = vpop.permute.xlu0 %295
        %297 = vrot.lane.b32.xlu0 %v140, 1
        %v298 = vpop.permute.xlu0 %297
        %299 = vrot.lane.b32.xlu0 %v141, 1
        %v300 = vpop.permute.xlu0 %299
        %301 = vrot.lane.b32.xlu0 %v142, 1
        %v302 = vpop.permute.xlu0 %301
        %303 = vrot.lane.b32.xlu0 %v143, 1
        %v304 = vpop.permute.xlu0 %303
        %305 = vrot.lane.b32.xlu0 %v144, 1
        %v306 = vpop.permute.xlu0 %305
        %307 = vrot.lane.b32.xlu0 %v145, 1
        %v308 = vpop.permute.xlu0 %307
        %vm317 = vcmask 7168
        %v318 = vsel %vm317, %v270, %v294
        %v319 = vsel %vm317, %v272, %v296
        %v320 = vsel %vm317, %v274, %v298
        %v321 = vsel %vm317, %v276, %v300
        %v322 = vsel %vm317, %v278, %v302
        %v323 = vsel %vm317, %v280, %v304
        %v324 = vsel %vm317, %v282, %v306
        %v325 = vsel %vm317, %v284, %v308
        %v326 = vlaneseq
        %v327 = vshrl.u32 %v326, 7
        %v328 = vadd.s32 %v327, 8
        %v329 = vlaneseq
        %v330 = vand.u32 %v329, 127
        %vm331 = vcmp.lt.s32.totalorder %v327, 15
        %vm332 = vcmp.lt.s32.totalorder %v328, 15
        %v333 = vsel %vm331, %v157, 0.0
        %v334 = vsel %vm332, %v179, 0.0
        %v335 = vsel %vm331, %v160, 0.0
        %v336 = vsel %vm332, %v180, 0.0
        %v337 = vsel %vm331, %v163, 0.0
        %v338 = vsel %vm332, %v181, 0.0
        %v339 = vsel %vm331, %v166, 0.0
        %v340 = vsel %vm332, %v182, 0.0
        %vm341 = vcmp.gt.s32.totalorder %v327, 0
        %vm342 = vcmp.gt.s32.totalorder %v328, 0
        %v343 = vsel %vm341, %v208, 0.0
        %v344 = vsel %vm342, %v193, 0.0
        %v345 = vsel %vm341, %v209, 0.0
        %v346 = vsel %vm342, %v195, 0.0
        %v347 = vsel %vm341, %v210, 0.0
        %v348 = vsel %vm342, %v197, 0.0
        %v349 = vsel %vm341, %v211, 0.0
        %v350 = vsel %vm342, %v199, 0.0
        %vm351 = vcmp.lt.s32.totalorder %v330, 15
        %v352 = vsel %vm351, %v261, 0.0
        %v353 = vsel %vm351, %v262, 0.0
        %v354 = vsel %vm351, %v263, 0.0
        %v355 = vsel %vm351, %v264, 0.0
        %v356 = vsel %vm351, %v265, 0.0
        %v357 = vsel %vm351, %v266, 0.0
        %v358 = vsel %vm351, %v267, 0.0
        %v359 = vsel %vm351, %v268, 0.0
        %vm360 = vcmp.gt.s32.totalorder %v330, 0
        %v361 = vsel %vm360, %v318, 0.0
        %v362 = vsel %vm360, %v319, 0.0
        %v363 = vsel %vm360, %v320, 0.0
        %v364 = vsel %vm360, %v321, 0.0
        %v365 = vsel %vm360, %v322, 0.0
        %v366 = vsel %vm360, %v323, 0.0
        %v367 = vsel %vm360, %v324, 0.0
        %v368 = vsel %vm360, %v325, 0.0
        %v369 = vsub.f32 %v333, %v343
        %v370 = vsub.f32 %v334, %v344
        %v371 = vsub.f32 %v335, %v345
        %v372 = vsub.f32 %v336, %v346
        %v373 = vsub.f32 %v337, %v347
        %v374 = vsub.f32 %v338, %v348
        %v375 = vsub.f32 %v339, %v349
        %v376 = vsub.f32 %v340, %v350
        %v377 = vsub.f32 %v352, %v361
        %v378 = vsub.f32 %v353, %v362
        %v379 = vsub.f32 %v354, %v363
        %v380 = vsub.f32 %v355, %v364
        %v381 = vsub.f32 %v356, %v365
        %v382 = vsub.f32 %v357, %v366
        %v383 = vsub.f32 %v358, %v367
        %v384 = vsub.f32 %v359, %v368
        %v385 = vmul.f32 %v369, %v369
        %v386 = vmul.f32 %v370, %v370
        %v387 = vmul.f32 %v371, %v371
        %v388 = vmul.f32 %v372, %v372
        %v389 = vmul.f32 %v373, %v373
        %v390 = vmul.f32 %v374, %v374
        %v391 = vmul.f32 %v375, %v375
        %v392 = vmul.f32 %v376, %v376
        %v393 = vmul.f32 %v377, %v377
        %v394 = vmul.f32 %v378, %v378
        %v395 = vmul.f32 %v379, %v379
        %v396 = vmul.f32 %v380, %v380
        %v397 = vmul.f32 %v381, %v381
        %v398 = vmul.f32 %v382, %v382
        %v399 = vmul.f32 %v383, %v383
        %v400 = vmul.f32 %v384, %v384
        %v401 = vadd.f32 %v385, %v393
        %v402 = vadd.f32 %v386, %v394
        %v403 = vadd.f32 %v387, %v395
        %v404 = vadd.f32 %v388, %v396
        %v405 = vadd.f32 %v389, %v397
        %v406 = vadd.f32 %v390, %v398
        %v407 = vadd.f32 %v391, %v399
        %v408 = vadd.f32 %v392, %v400
        %v409 = vadd.f32 %v401, 1e-06
        %v410 = vadd.f32 %v402, 1e-06
        %v411 = vadd.f32 %v403, 1e-06
        %v412 = vadd.f32 %v404, 1e-06
        %v413 = vadd.f32 %v405, 1e-06
        %v414 = vadd.f32 %v406, 1e-06
        %v415 = vadd.f32 %v407, 1e-06
        %v416 = vadd.f32 %v408, 1e-06
        %v417 = vrsqrt.pop %v409
        %v418 = vmul.f32 %v409, %v417
        %vm419 = vcmp.eq.f32.partialorder %v409, inf
        %v420 = vsel %vm419, %v409, %v418
        %vm421 = vcmp.eq.f32.partialorder %v409, 0.0
        %v422 = vand.u32 %v409, 2147483648
        %v423 = vsel %vm421, %v422, %v420
        %v424 = vrsqrt.pop %v410
        %v425 = vmul.f32 %v410, %v424
        %vm426 = vcmp.eq.f32.partialorder %v410, inf
        %v427 = vsel %vm426, %v410, %v425
        %vm428 = vcmp.eq.f32.partialorder %v410, 0.0
        %v429 = vand.u32 %v410, 2147483648
        %v430 = vsel %vm428, %v429, %v427
        %v431 = vrsqrt.pop %v411
        %v432 = vmul.f32 %v411, %v431
        %vm433 = vcmp.eq.f32.partialorder %v411, inf
        %v434 = vsel %vm433, %v411, %v432
        %vm435 = vcmp.eq.f32.partialorder %v411, 0.0
        %v436 = vand.u32 %v411, 2147483648
        %v437 = vsel %vm435, %v436, %v434
        %v438 = vrsqrt.pop %v412
        %v439 = vmul.f32 %v412, %v438
        %vm440 = vcmp.eq.f32.partialorder %v412, inf
        %v441 = vsel %vm440, %v412, %v439
        %vm442 = vcmp.eq.f32.partialorder %v412, 0.0
        %v443 = vand.u32 %v412, 2147483648
        %v444 = vsel %vm442, %v443, %v441
        %v445 = vrsqrt.pop %v413
        %v446 = vmul.f32 %v413, %v445
        %vm447 = vcmp.eq.f32.partialorder %v413, inf
        %v448 = vsel %vm447, %v413, %v446
        %vm449 = vcmp.eq.f32.partialorder %v413, 0.0
        %v450 = vand.u32 %v413, 2147483648
        %v451 = vsel %vm449, %v450, %v448
        %v452 = vrsqrt.pop %v414
        %v453 = vmul.f32 %v414, %v452
        %vm454 = vcmp.eq.f32.partialorder %v414, inf
        %v455 = vsel %vm454, %v414, %v453
        %vm456 = vcmp.eq.f32.partialorder %v414, 0.0
        %v457 = vand.u32 %v414, 2147483648
        %v458 = vsel %vm456, %v457, %v455
        %v459 = vrsqrt.pop %v415
        %v460 = vmul.f32 %v415, %v459
        %vm461 = vcmp.eq.f32.partialorder %v415, inf
        %v462 = vsel %vm461, %v415, %v460
        %vm463 = vcmp.eq.f32.partialorder %v415, 0.0
        %v464 = vand.u32 %v415, 2147483648
        %v465 = vsel %vm463, %v464, %v462
        %v466 = vrsqrt.pop %v416
        %v467 = vmul.f32 %v416, %v466
        %vm468 = vcmp.eq.f32.partialorder %v416, inf
        %v469 = vsel %vm468, %v416, %v467
        %vm470 = vcmp.eq.f32.partialorder %v416, 0.0
        %v471 = vand.u32 %v416, 2147483648
        %v472 = vsel %vm470, %v471, %v469
        %vm473 = vcmask 130048
        %474 = vst.msk [vmem:[%s135] sm:$0xff] %vm473, %v423
        %475 = vst.msk [vmem:[%s135 + $0x8] sm:$0xff] %vm473, %v430
        %476 = vst.msk [vmem:[%s135 + $0x10] sm:$0xff] %vm473, %v437
        %477 = vst.msk [vmem:[%s135 + $0x18] sm:$0xff] %vm473, %v444
        %478 = vst.msk [vmem:[%s135 + $0x20] sm:$0xff] %vm473, %v451
        %479 = vst.msk [vmem:[%s135 + $0x28] sm:$0xff] %vm473, %v458
        %480 = vst.msk [vmem:[%s135 + $0x30] sm:$0xff] %vm473, %v465
        %481 = vst.msk [vmem:[%s135 + $0x38] sm:$0xff] %vm473, %v472
        %s482 = sand.u32 %s52, 1
        %s483 = scalar_lea.sflag [#allocation4], %s482
        %s484 = sand.u32 %s52, 1
        %s485 = smul.addr %s484, 64
        %s486 = scalar_lea.vmem [#allocation5], %s485
        // Predicated region
        $region29: #{tpu_custom_call.1} parent=23 // pred_check
          %p487 = pneg %p62
        $region30: #{tpu_custom_call.1} parent=23 // pred_check_branch
          %489 = sbr.rel (%p487) target = $region32
        $region31: #{tpu_custom_call.1} parent=23 // pred_region
          %s490 = smul.u32 4, %s18
          %s492 = ssub.s32 1024, 1024
          %493 = vsyncadd %s483, %s492
          %s494 = smul.addr %s490, 2
          %s495 = smul.addr %s494, 128
          %s496 = scalar_lea.hbm %s1, %s495
          %s497 = sshll.u32 %s486, 4
          %s498 = int_to_ptr.vmem [resolvable:$true] %s497
          %503 = dma.vmem_to_hbm [thread:$0]  %s498, 1024, %s496, %s483, 128, 128, 8
        $region32: #{tpu_custom_call.1} parent=23 // pred_fallthru
          _
      $region24: #{tpu_custom_call.1} parent=5 // pred_fallthru
        _
      %p504 = scmp.le.s32.totalorder 2, %s13
      // Predicated region
      $region33: #{tpu_custom_call.1} parent=5 // pred_check
        %p505 = pneg %p504
      $region34: #{tpu_custom_call.1} parent=5 // pred_check_branch
        %507 = sbr.rel (%p505) target = $region36
      $region35: #{tpu_custom_call.1} parent=5 // pred_region
        %s508 = ssub.s32 %s13, 2
        // Predicated region
        $region37: #{tpu_custom_call.1} parent=35 // pred_check
          %p509 = pneg %p68
        $region38: #{tpu_custom_call.1} parent=35 // pred_check_branch
          %511 = sbr.rel (%p509) target = $region40
        $region39: #{tpu_custom_call.1} parent=35 // pred_region
          %s512 = sand.u32 %s53, 1
          %s513 = scalar_lea.sflag [#allocation4], %s512
          %s514 = sand.u32 %s53, 1
          %s515 = smul.addr %s514, 64
          %s516 = scalar_lea.vmem [#allocation5], %s515
          %517 = dma.done %s513, 1024
        $region40: #{tpu_custom_call.1} parent=35 // pred_fallthru
          _
      $region36: #{tpu_custom_call.1} parent=5 // pred_fallthru
        _
    $region6: #{tpu_custom_call.1} parent=1 // loop_footer
      %s17 = sadd.s32 1, %s13
    $region7: #{tpu_custom_call.1} parent=1 // loop_footer_branch
      %12 = sbr.rel target = $region3
    $region8: #{tpu_custom_call.1} parent=1 // loop_exit
      _
    %518 = vsyncpa [#allocation3], 1
    %s519 = scalar_lea.sflag [#allocation3], 1
    %520 = vsyncpa %s519, 1
    %521 = vsyncpa [#allocation4], 1
    %s522 = scalar_lea.sflag [#allocation4], 1
    %523 = vsyncpa %s522, 1

</llo_original>
